<compile_context>
chip_gen: v6e
topology: v6e:2x2x1
jax: 0.10.0
libtpu: 0.0.40
codegen_flags: <defaults>
</compile_context>

<pallas_src>
import functools
import math
from typing import NamedTuple

import jax
import jax.numpy as jnp
from jax import lax
from jax.experimental import pallas as pl
from jax.experimental.pallas import tpu as pltpu


def _round_up(x: int, m: int) -> int:
    return (x + m - 1) // m * m


def _vmem_caps():
    """(scoped vmem limit to request, tile-sizing budget) in bytes."""
    try:
        cap = int(pltpu.get_tpu_info().vmem_capacity_bytes)
    except Exception:  # no TPU / old runtime: conservative default
        cap = 64 * 1024 * 1024
    return int(cap * 0.85), int(cap * 0.70)


class FFNPlan(NamedTuple):
    tm: int          # token tile (rows)
    ti: int          # intermediate-dim tile
    I_pad: int       # padded intermediate size
    vmem_limit: int  # scoped VMEM limit to request


def plan_ffn(M: int, H: int, I: int, *, x_dtype, compute_dtype) -> FFNPlan:
    """Pick tiles from the problem size and the chip's VMEM capacity."""
    vmem_limit, budget = _vmem_caps()
    in_isz = jnp.dtype(compute_dtype).itemsize
    out_isz = jnp.dtype(x_dtype).itemsize
    need_acc = jnp.dtype(x_dtype) != jnp.dtype(jnp.float32)

    # Lane-dim padding of the intermediate axis; keep multiples of 256 when possible
    # (2x256^2 MXU on v6e/v7x), 128 otherwise.
    I_pad = _round_up(I, 256) if I >= 256 else _round_up(I, 128)
    tm_cap = min(_round_up(max(M, 1), 16), 1024)   # 16: bf16 sublane packing

    def fits(tm, ti):
        w = 2 * (H * ti + ti * H) * in_isz          # W1 + W2 tiles, double-buffered
        b = 2 * (ti + H) * 4                        # biases
        xb = 2 * tm * H * in_isz                    # x tile, double-buffered
        ob = 2 * tm * H * out_isz                   # out tile, double-buffered
        ab = tm * H * 4 if need_acc else 0          # accumulator scratch (non-f32 out)
        return w + b + xb + ob + ab <= budget

    # Largest ti (multiple of 128, dividing I_pad) that fits with a decent token tile.
    # ti == I_pad => weights are grid-resident and DMA'd exactly once.
    ti_candidates = sorted((d for d in range(128, I_pad + 1, 128) if I_pad % d == 0),
                           reverse=True)
    tm_min = min(tm_cap, 256)
    ti = next((t for t in ti_candidates if fits(tm_min, t)), ti_candidates[-1])

    # Maximize tm under the budget: arithmetic intensity ~ tm FLOP per weight byte,
    # so this is the main roofline lever on all three generations.
    fixed = 2 * (H * ti + ti * H) * in_isz + 2 * (ti + H) * 4
    per_row = H * (2 * in_isz + 2 * out_isz + (4 if need_acc else 0))
    tm_fit = max(16, (budget - fixed) // per_row)
    tm = min(tm_cap, tm_fit)
    tm = (tm // 256) * 256 if tm >= 256 else max(16, (tm // 16) * 16)

    # Compute-bound + resident weights: keep >= 2 token tiles so the parallel axis
    # can shard across both TensorCores on v7x (megacore on others).
    if ti == I_pad and tm >= 512 and _round_up(M, tm) // tm < 2:
        tm = max(256, _round_up(tm // 2, 256))

    return FFNPlan(tm=tm, ti=ti, I_pad=I_pad, vmem_limit=vmem_limit)


def prepare_ffn_weights(w1, b1, w2, b2, plan: FFNPlan, *, compute_dtype=jnp.float32):
    """Cast + pad the weights ONCE (hoisted out of the per-call wrapper).

    w1: [H, I] (dense_1.weight^T), b1: [I], w2: [I, H] (dense_2.weight^T), b2: [H].
    Zero-padding the intermediate dim is exact: gelu(0 + 0) = 0 and the padded
    rows of W2 are zero.
    """
    H, I = w1.shape
    I_pad = plan.I_pad
    w1c = w1.astype(compute_dtype)
    w2c = w2.astype(compute_dtype)
    b1_2d = b1.reshape(1, I).astype(jnp.float32)
    b2_2d = b2.reshape(1, H).astype(jnp.float32)
    if I_pad != I:
        w1c = jnp.pad(w1c, ((0, 0), (0, I_pad - I)))
        b1_2d = jnp.pad(b1_2d, ((0, 0), (0, I_pad - I)))
        w2c = jnp.pad(w2c, ((0, I_pad - I), (0, 0)))
    return w1c, b1_2d, w2c, b2_2d


def _ffn_kernel(x_ref, w1_ref, b1_ref, w2_ref, b2_ref, o_ref, *scratch,
                approximate_gelu: bool):
    # x_ref:  (tm, H)   token tile (compute dtype)
    # w1_ref: (H, ti)   dense_1 weight tile (stored transposed)
    # b1_ref: (1, ti)   f32
    # w2_ref: (ti, H)   dense_2 weight tile (stored transposed)
    # b2_ref: (1, H)    f32
    # o_ref:  (tm, H)   output tile, resident across the k (reduction) axis
    # scratch: optional (tm, H) f32 accumulator, only when o_ref dtype != f32
    acc_ref = scratch[0] if scratch else o_ref   # f32 output accumulates in place
    k = pl.program_id(1)

    @pl.when(k == 0)
    def _():
        acc_ref[...] = jnp.zeros_like(acc_ref)

    # dense_1 slice, f32 accumulation on the MXU.
    h = jnp.dot(x_ref[...], w1_ref[...], preferred_element_type=jnp.float32)
    h = h + b1_ref[...]

    if approximate_gelu:
        # tanh approximation -> EUP slot; slightly different numerics vs torch default.
        h = jax.nn.gelu(h, approximate=True)
    else:
        # exact GELU: 0.5 * h * (1 + erf(h / sqrt(2))) == torch.F.gelu default.
        h = 0.5 * h * (1.0 + lax.erf(h * (1.0 / math.sqrt(2.0))))

    # TODO(synk): training-mode dropout not implemented (identity at inference).

    # dense_2 partial product for this k slice.
    acc_ref[...] += jnp.dot(h.astype(w2_ref.dtype), w2_ref[...],
                            preferred_element_type=jnp.float32)

    @pl.when(k == pl.num_programs(1) - 1)
    def _():
        o_ref[...] = (acc_ref[...] + b2_ref[...]).astype(o_ref.dtype)


def sinhala_feed_forward(x, prepared, plan: FFNPlan, *, approximate_gelu=False):
    """FFN forward. x: [B, S, H]; `prepared` from prepare_ffn_weights()."""
    w1c, b1_2d, w2c, b2_2d = prepared
    B, S, H = x.shape
    I_pad = plan.I_pad
    ti = plan.ti
    M = B * S
    compute_dtype = w1c.dtype

    tm = min(plan.tm, _round_up(M, 16))
    M_pad = _round_up(M, tm)
    num_m = M_pad // tm
    num_k = I_pad // ti
    need_acc = jnp.dtype(x.dtype) != jnp.dtype(jnp.float32)

    x2d = x.reshape(M, H).astype(compute_dtype)
    if M_pad != M:
        x2d = jnp.pad(x2d, ((0, M_pad - M), (0, 0)))

    # Serpentine reduction order: on odd token tiles walk the weight slices backwards
    # so the last slice of tile i is reused as the first slice of tile i+1.
    if num_k > 1:
        def _k(i, k):
            return jnp.where(i % 2 == 0, k, num_k - 1 - k)
    else:
        def _k(i, k):
            return k

    in_isz = jnp.dtype(compute_dtype).itemsize
    w_bytes = 2 * H * I_pad * in_isz
    weight_traffic = w_bytes if num_k == 1 else num_m * w_bytes
    cost = pl.CostEstimate(
        flops=4 * M_pad * H * I_pad,                    # two matmuls
        transcendentals=M_pad * I_pad,                  # erf/tanh per intermediate elem
        bytes_accessed=(M_pad * H * in_isz
                        + M_pad * H * jnp.dtype(x.dtype).itemsize
                        + weight_traffic + (I_pad + H) * 4),
    )

    kernel = functools.partial(_ffn_kernel, approximate_gelu=approximate_gelu)

    out2d = pl.pallas_call(
        kernel,
        out_shape=jax.ShapeDtypeStruct((M_pad, H), x.dtype),
        grid_spec=pltpu.PrefetchScalarGridSpec(
            num_scalar_prefetch=0,
            grid=(num_m, num_k),                               # tokens, then reduction
            in_specs=[
                pl.BlockSpec((tm, H), lambda i, k: (i, 0)),    # x tile
                pl.BlockSpec((H, ti), lambda i, k: (0, _k(i, k))),   # W1 tile
                pl.BlockSpec((1, ti), lambda i, k: (0, _k(i, k))),   # b1 tile
                pl.BlockSpec((ti, H), lambda i, k: (_k(i, k), 0)),   # W2 tile
                pl.BlockSpec((1, H), lambda i, k: (0, 0)),           # b2
            ],
            out_specs=pl.BlockSpec((tm, H), lambda i, k: (i, 0)),
            scratch_shapes=([pltpu.VMEM((tm, H), jnp.float32)] if need_acc else []),
        ),
        compiler_params=pltpu.CompilerParams(
            dimension_semantics=("parallel", "arbitrary"),
            vmem_limit_bytes=plan.vmem_limit,
        ),
        cost_estimate=cost,
    )(x2d, w1c, b1_2d, w2c, b2_2d)

    if M_pad != M:
        out2d = out2d[:M]
    return out2d.reshape(B, S, H)


def _reference(x2d, w1, b1, w2, b2):
    h = x2d @ w1 + b1
    h = 0.5 * h * (1.0 + lax.erf(h / jnp.sqrt(2.0)))
    return h @ w2 + b2


if __name__ == "__main__":
    # Small shapes consistent with the module (hidden/intermediate scaled down).
    # M = B*S = 20 exercises the token-padding path.
    B, S, H, I = 2, 10, 128, 512

    key = jax.random.PRNGKey(0)
    kx, kw1, kb1, kw2, kb2 = jax.random.split(key, 5)

    x = jax.random.normal(kx, (B, S, H), dtype=jnp.float32)
    # Deterministic "init" mimicking nn.Linear scale (~initializer_range).
    w1 = 0.02 * jax.random.normal(kw1, (H, I), dtype=jnp.float32)   # dense_1.weight^T
    b1 = 0.02 * jax.random.normal(kb1, (I,), dtype=jnp.float32)
    w2 = 0.02 * jax.random.normal(kw2, (I, H), dtype=jnp.float32)   # dense_2.weight^T
    b2 = 0.02 * jax.random.normal(kb2, (H,), dtype=jnp.float32)

    y_ref = _reference(x.reshape(-1, H), w1, b1, w2, b2).reshape(B, S, H)
    M = B * S

    # 1) Exact f32 path, weight-resident (ti == I_pad): matches the fp32 torch module.
    plan_f32 = plan_ffn(M, H, I, x_dtype=x.dtype, compute_dtype=jnp.float32)
    prep_f32 = prepare_ffn_weights(w1, b1, w2, b2, plan_f32, compute_dtype=jnp.float32)
    y_f32 = jax.block_until_ready(sinhala_feed_forward(x, prep_f32, plan_f32))
    assert jnp.allclose(y_f32, y_ref, atol=1e-5, rtol=1e-5), "f32 kernel mismatch"

    # 2) Streamed-reduction path (forced ti=256 -> num_k=2, serpentine index maps).
    plan_stream = plan_f32._replace(ti=256)
    y_stream = jax.block_until_ready(sinhala_feed_forward(x, prep_f32, plan_stream))
    assert jnp.allclose(y_stream, y_ref, atol=1e-5, rtol=1e-5), "streamed kernel mismatch"

    # 3) Fast bf16-operand opt-in (f32 accumulation) -- looser tolerance.
    plan_bf16 = plan_ffn(M, H, I, x_dtype=x.dtype, compute_dtype=jnp.bfloat16)
    prep_bf16 = prepare_ffn_weights(w1, b1, w2, b2, plan_bf16, compute_dtype=jnp.bfloat16)
    y_bf16 = jax.block_until_ready(sinhala_feed_forward(x, prep_bf16, plan_bf16))
    assert jnp.allclose(y_bf16, y_ref, atol=1e-2, rtol=1e-2), "bf16 kernel mismatch"

    print("KERNEL_OK")
</pallas_src>

<mosaic_0001>
module attributes {stable_mosaic.version = 11 : i64} {
  func.func @_ffn_kernel(%arg0: i32, %arg1: i32, %arg2: memref<32x128xf32, #tpu.memory_space<vmem>>, %arg3: memref<128x512xf32, #tpu.memory_space<vmem>>, %arg4: memref<1x512xf32, #tpu.memory_space<vmem>>, %arg5: memref<512x128xf32, #tpu.memory_space<vmem>>, %arg6: memref<1x128xf32, #tpu.memory_space<vmem>>, %arg7: memref<32x128xf32, #tpu.memory_space<vmem>>) attributes {dimension_semantics = [#tpu.dimension_semantics<parallel>, #tpu.dimension_semantics<arbitrary>], iteration_bounds = array<i64: 1, 1>, scalar_prefetch = 0 : i64, scratch_operands = 0 : i64, tpu.core_type = #tpu.core_type<tc>, window_params = [{transform_indices = @transform_0, window_bounds = array<i64: 32, 128>}, {transform_indices = @transform_1, window_bounds = array<i64: 128, 512>}, {transform_indices = @transform_2, window_bounds = array<i64: 1, 512>}, {transform_indices = @transform_3, window_bounds = array<i64: 512, 128>}, {pipeline_mode = #tpu.pipeline_mode<synchronous>, transform_indices = @transform_4, window_bounds = array<i64: 1, 128>}, {transform_indices = @transform_5, window_bounds = array<i64: 32, 128>}]} {
    %c0_i32 = arith.constant 0 : i32
    %0 = arith.cmpi eq, %arg1, %c0_i32 : i32
    %1 = arith.extui %0 : i1 to i32
    %c0_i32_0 = arith.constant 0 : i32
    %2 = arith.cmpi ne, %1, %c0_i32_0 : i32
    scf.if %2 {
      %cst_18 = arith.constant 0.000000e+00 : f32
      %25 = vector.broadcast %cst_18 : f32 to vector<32x128xf32>
      %c0_19 = arith.constant 0 : index
      %c0_20 = arith.constant 0 : index
      %26 = vector.load %arg7[%c0_19, %c0_20] : memref<32x128xf32, #tpu.memory_space<vmem>>, vector<32x128xf32>
      tpu.vector_store %arg7[%c0_19, %c0_20], %25 {strides = array<i32>} : memref<32x128xf32, #tpu.memory_space<vmem>>, vector<32x128xf32>,
    } else {
    }
    %c0 = arith.constant 0 : index
    %c0_1 = arith.constant 0 : index
    %3 = vector.load %arg2[%c0, %c0_1] : memref<32x128xf32, #tpu.memory_space<vmem>>, vector<32x128xf32>
    %c0_2 = arith.constant 0 : index
    %c0_3 = arith.constant 0 : index
    %4 = vector.load %arg3[%c0_2, %c0_3] : memref<128x512xf32, #tpu.memory_space<vmem>>, vector<128x512xf32>
    %cst = arith.constant dense<0.000000e+00> : vector<32x512xf32>
    %5 = tpu.matmul %3, %4, %cst {dimension_numbers = #tpu.dot_dimension_numbers<[1], [0], [0], [1], [0, 0, 1, 1], [], []>} : vector<32x128xf32>, vector<128x512xf32>, vector<32x512xf32> -> vector<32x512xf32>
    %c0_4 = arith.constant 0 : index
    %c0_5 = arith.constant 0 : index
    %6 = vector.load %arg4[%c0_4, %c0_5] : memref<1x512xf32, #tpu.memory_space<vmem>>, vector<1x512xf32>
    %7 = vector.broadcast %6 : vector<1x512xf32> to vector<32x512xf32>
    %8 = arith.addf %5, %7 : vector<32x512xf32>
    %cst_6 = arith.constant 5.000000e-01 : f32
    %9 = vector.broadcast %cst_6 : f32 to vector<32x512xf32>
    %10 = arith.mulf %9, %8 : vector<32x512xf32>
    %cst_7 = arith.constant 0.707106769 : f32
    %11 = vector.broadcast %cst_7 : f32 to vector<32x512xf32>
    %12 = arith.mulf %8, %11 : vector<32x512xf32>
    %13 = math.erf %12 : vector<32x512xf32>
    %cst_8 = arith.constant 1.000000e+00 : f32
    %14 = vector.broadcast %cst_8 : f32 to vector<32x512xf32>
    %15 = arith.addf %14, %13 : vector<32x512xf32>
    %16 = arith.mulf %10, %15 : vector<32x512xf32>
    %c0_9 = arith.constant 0 : index
    %c0_10 = arith.constant 0 : index
    %17 = vector.load %arg7[%c0_9, %c0_10] : memref<32x128xf32, #tpu.memory_space<vmem>>, vector<32x128xf32>
    %c0_11 = arith.constant 0 : index
    %c0_12 = arith.constant 0 : index
    %18 = vector.load %arg5[%c0_11, %c0_12] : memref<512x128xf32, #tpu.memory_space<vmem>>, vector<512x128xf32>
    %cst_13 = arith.constant dense<0.000000e+00> : vector<32x128xf32>
    %19 = tpu.matmul %16, %18, %cst_13 {dimension_numbers = #tpu.dot_dimension_numbers<[1], [0], [0], [1], [0, 0, 1, 1], [], []>} : vector<32x512xf32>, vector<512x128xf32>, vector<32x128xf32> -> vector<32x128xf32>
    %20 = arith.addf %17, %19 : vector<32x128xf32>
    %c0_14 = arith.constant 0 : index
    %c0_15 = arith.constant 0 : index
    %21 = vector.load %arg7[%c0_14, %c0_15] : memref<32x128xf32, #tpu.memory_space<vmem>>, vector<32x128xf32>
    tpu.vector_store %arg7[%c0_14, %c0_15], %20 {strides = array<i32>} : memref<32x128xf32, #tpu.memory_space<vmem>>, vector<32x128xf32>,
    %c0_i32_16 = arith.constant 0 : i32
    %22 = arith.cmpi eq, %arg1, %c0_i32_16 : i32
    %23 = arith.extui %22 : i1 to i32
    %c0_i32_17 = arith.constant 0 : i32
    %24 = arith.cmpi ne, %23, %c0_i32_17 : i32
    scf.if %24 {
      %c0_18 = arith.constant 0 : index
      %c0_19 = arith.constant 0 : index
      %25 = vector.load %arg7[%c0_18, %c0_19] : memref<32x128xf32, #tpu.memory_space<vmem>>, vector<32x128xf32>
      %c0_20 = arith.constant 0 : index
      %c0_21 = arith.constant 0 : index
      %26 = vector.load %arg6[%c0_20, %c0_21] : memref<1x128xf32, #tpu.memory_space<vmem>>, vector<1x128xf32>
      %27 = vector.broadcast %26 : vector<1x128xf32> to vector<32x128xf32>
      %28 = arith.addf %25, %27 : vector<32x128xf32>
      %c0_22 = arith.constant 0 : index
      %c0_23 = arith.constant 0 : index
      %29 = vector.load %arg7[%c0_22, %c0_23] : memref<32x128xf32, #tpu.memory_space<vmem>>, vector<32x128xf32>
      tpu.vector_store %arg7[%c0_22, %c0_23], %28 {strides = array<i32>} : memref<32x128xf32, #tpu.memory_space<vmem>>, vector<32x128xf32>,
    } else {
    }
    return
  }
  func.func @transform_0(%arg0: i32, %arg1: i32) -> (i32, i32) {
    %c0_i32 = arith.constant 0 : i32
    %c0_i32_0 = arith.constant 0 : i32
    return %arg0, %c0_i32 : i32, i32
  }
  func.func @transform_1(%arg0: i32, %arg1: i32) -> (i32, i32) {
    %c0_i32 = arith.constant 0 : i32
    %c0_i32_0 = arith.constant 0 : i32
    return %c0_i32, %arg1 : i32, i32
  }
  func.func @transform_2(%arg0: i32, %arg1: i32) -> (i32, i32) {
    %c0_i32 = arith.constant 0 : i32
    %c0_i32_0 = arith.constant 0 : i32
    return %c0_i32, %arg1 : i32, i32
  }
  func.func @transform_3(%arg0: i32, %arg1: i32) -> (i32, i32) {
    %c0_i32 = arith.constant 0 : i32
    %c0_i32_0 = arith.constant 0 : i32
    return %arg1, %c0_i32 : i32, i32
  }
  func.func @transform_4(%arg0: i32, %arg1: i32) -> (i32, i32) {
    %c0_i32 = arith.constant 0 : i32
    %c0_i32_0 = arith.constant 0 : i32
    %c0_i32_1 = arith.constant 0 : i32
    return %c0_i32, %c0_i32_0 : i32, i32
  }
  func.func @transform_5(%arg0: i32, %arg1: i32) -> (i32, i32) {
    %c0_i32 = arith.constant 0 : i32
    %c0_i32_0 = arith.constant 0 : i32
    return %arg0, %c0_i32 : i32, i32
  }
}

</mosaic_0001>

<llo_original>
// kernel: tpu_custom_call.1
$region0: #{tpu_custom_call.1}
  #allocation0 [shape = 'u32[]', space=smem, size = 0x4, offset = 0x4, fixed_abs, tag = 'smem constant byte address 0x4 - core index']
  #allocation1 [shape = 'u32[144,128]{1,0:T(1,128)}', space=vmem, size = 0x12000, scoped, tag = 'internal scratch']
  %s0 = inlined_call_operand.hbm [shape: f32[32,128], index: 0, kind: input, shape index: {}]
  %s1 = inlined_call_operand.hbm [shape: f32[128,512], index: 1, kind: input, shape index: {}]
  %s2 = inlined_call_operand.hbm [shape: f32[1,512], index: 2, kind: input, shape index: {}]
  %s3 = inlined_call_operand.hbm [shape: f32[512,128], index: 3, kind: input, shape index: {}]
  %s4 = inlined_call_operand.vmem [shape: f32[1,128], index: 4, kind: input, shape index: {}]
  %s5 = inlined_call_operand.hbm [shape: f32[32,128], index: 5, kind: output, shape index: {}]
  %s6 = sld [smem:[#allocation0]]
  $region54: #{tpu_custom_call.1} parent=0
    _
  %s8 = ssub.s32 1, %s6
  %s9 = scalar_select 0, %s8, %s6
  $region1: #{tpu_custom_call.1} parent=0
    #allocation2 [shape = 'u8[16384]{0}', space=vmem, size = 0x4000, scoped, tag = 'input window, operand 0, single buffered']
    #allocation3 [shape = 's32[1]{0}', space=sflag, size = 0x4, scoped, tag = 'scoped memory for tpu_custom_call.1']
    #allocation4 [shape = 's32[1]{0}', space=sflag, size = 0x4, scoped, tag = 'scoped memory for tpu_custom_call.1']
    #allocation5 [shape = 'u8[262144]{0}', space=vmem, size = 0x40000, scoped, tag = 'input window, operand 1, single buffered']
    #allocation6 [shape = 's32[1]{0}', space=sflag, size = 0x4, scoped, tag = 'scoped memory for tpu_custom_call.1']
    #allocation7 [shape = 'u8[2048]{0}', space=vmem, size = 0x800, scoped, tag = 'input window, operand 2, single buffered']
    #allocation8 [shape = 'u8[262144]{0}', space=vmem, size = 0x40000, scoped, tag = 'input window, operand 3, single buffered']
    #allocation9 [shape = 's32[1]{0}', space=sflag, size = 0x4, scoped, tag = 'scoped memory for tpu_custom_call.1']
    #allocation10 [shape = 'u8[16384]{0}', space=vmem, size = 0x4000, scoped, tag = 'output window, operand 0, single buffered']
    %10 = vsyncpa [#allocation3], 0
    %11 = vsyncpa [#allocation6], 0
    %12 = vsyncpa [#allocation9], 0
    %13 = vsyncpa [#allocation4], 0
    // Predicated region
    $region2: #{tpu_custom_call.1} parent=1 // pred_check
      _
    $region3: #{tpu_custom_call.1} parent=1 // pred_check_branch
      %15 = sbr.rel (0) target = $region5
    $region4: #{tpu_custom_call.1} parent=1 // pred_region
      %s17 = ssub.s32 512, 512
      %18 = vsyncadd [#allocation3], %s17
      %s19 = sshll.u32 [#allocation2], 4
      %s20 = int_to_ptr.vmem [resolvable:$true] %s19
      %25 = dma.hbm_to_vmem [thread:$0]  %s0, 512, %s20, [#allocation3], 128, 128, 8
    $region5: #{tpu_custom_call.1} parent=1 // pred_fallthru
      _
    // Predicated region
    $region6: #{tpu_custom_call.1} parent=1 // pred_check
      _
    $region7: #{tpu_custom_call.1} parent=1 // pred_check_branch
      %27 = sbr.rel (0) target = $region9
    $region8: #{tpu_custom_call.1} parent=1 // pred_region
      %s29 = ssub.s32 8192, 8192
      %30 = vsyncadd [#allocation6], %s29
      %s31 = sshll.u32 [#allocation5], 4
      %s32 = int_to_ptr.vmem [resolvable:$true] %s31
      %37 = dma.hbm_to_vmem [thread:$0]  %s1, 8192, %s32, [#allocation6], 512, 512, 32
    $region9: #{tpu_custom_call.1} parent=1 // pred_fallthru
      _
    // Predicated region
    $region10: #{tpu_custom_call.1} parent=1 // pred_check
      _
    $region11: #{tpu_custom_call.1} parent=1 // pred_check_branch
      %39 = sbr.rel (0) target = $region13
    $region12: #{tpu_custom_call.1} parent=1 // pred_region
      %s41 = ssub.s32 64, 64
      %42 = vsyncadd [#allocation6], %s41
      %s44 = sshll.u32 [#allocation7], 4
      %s45 = int_to_ptr.vmem [resolvable:$true] %s44
      %47 = dma.hbm_to_vmem [thread:$0]  %s2, 64, %s45, [#allocation6]
    $region13: #{tpu_custom_call.1} parent=1 // pred_fallthru
      _
    // Predicated region
    $region14: #{tpu_custom_call.1} parent=1 // pred_check
      _
    $region15: #{tpu_custom_call.1} parent=1 // pred_check_branch
      %49 = sbr.rel (0) target = $region17
    $region16: #{tpu_custom_call.1} parent=1 // pred_region
      %s51 = ssub.s32 8192, 8192
      %52 = vsyncadd [#allocation9], %s51
      %s53 = sshll.u32 [#allocation8], 4
      %s54 = int_to_ptr.vmem [resolvable:$true] %s53
      %59 = dma.hbm_to_vmem [thread:$0]  %s3, 8192, %s54, [#allocation9], 128, 128, 8
    $region17: #{tpu_custom_call.1} parent=1 // pred_fallthru
      _
    // Predicated region
    $region18: #{tpu_custom_call.1} parent=1 // pred_check
      _
    $region19: #{tpu_custom_call.1} parent=1 // pred_check_branch
      %61 = sbr.rel (0) target = $region21
    $region20: #{tpu_custom_call.1} parent=1 // pred_region
      _
    $region21: #{tpu_custom_call.1} parent=1 // pred_fallthru
      _
    // Predicated region
    $region22: #{tpu_custom_call.1} parent=1 // pred_check
      _
    $region23: #{tpu_custom_call.1} parent=1 // pred_check_branch
      %63 = sbr.rel (0) target = $region25
    $region24: #{tpu_custom_call.1} parent=1 // pred_region
      %64 = dma.done [#allocation3], 512
    $region25: #{tpu_custom_call.1} parent=1 // pred_fallthru
      _
    // Predicated region
    $region26: #{tpu_custom_call.1} parent=1 // pred_check
      _
    $region27: #{tpu_custom_call.1} parent=1 // pred_check_branch
      %66 = sbr.rel (0) target = $region29
    $region28: #{tpu_custom_call.1} parent=1 // pred_region
      %67 = dma.done [#allocation6], 8192
    $region29: #{tpu_custom_call.1} parent=1 // pred_fallthru
      _
    // Predicated region
    $region30: #{tpu_custom_call.1} parent=1 // pred_check
      _
    $region31: #{tpu_custom_call.1} parent=1 // pred_check_branch
      %69 = sbr.rel (0) target = $region33
    $region32: #{tpu_custom_call.1} parent=1 // pred_region
      %70 = dma.done [#allocation6], 64
    $region33: #{tpu_custom_call.1} parent=1 // pred_fallthru
      _
    // Predicated region
    $region34: #{tpu_custom_call.1} parent=1 // pred_check
      _
    $region35: #{tpu_custom_call.1} parent=1 // pred_check_branch
      %72 = sbr.rel (0) target = $region37
    $region36: #{tpu_custom_call.1} parent=1 // pred_region
      %73 = dma.done [#allocation9], 8192
    $region37: #{tpu_custom_call.1} parent=1 // pred_fallthru
      _
    %p74 = scmp.eq.s32.totalorder 0, 0
    // Predicated region
    $region38: #{tpu_custom_call.1} parent=1 // pred_check
      %p75 = pneg %p74
    $region39: #{tpu_custom_call.1} parent=1 // pred_check_branch
      %77 = sbr.rel (%p75) target = $region41
    $region40: #{tpu_custom_call.1} parent=1 // pred_region
      %78 = vst [vmem:[#allocation10] sm:$0xff] 0.0
      %79 = vst [vmem:[#allocation10 + $0x8] sm:$0xff] 0.0
      %80 = vst [vmem:[#allocation10 + $0x10] sm:$0xff] 0.0
      %81 = vst [vmem:[#allocation10 + $0x18] sm:$0xff] 0.0
    $region41: #{tpu_custom_call.1} parent=1 // pred_fallthru
      _
    %v82 = vld [vmem:[#allocation2] sm:$0xff]
    %v83 = vld [vmem:[#allocation2 + $0x8] sm:$0xff]
    %v84 = vld [vmem:[#allocation2 + $0x10] sm:$0xff]
    %v85 = vld [vmem:[#allocation2 + $0x18] sm:$0xff]
    %v86 = vld [vmem:[#allocation5] sm:$0xff]
    %v87 = vld [vmem:[#allocation5 + $0x8] sm:$0xff]
    %v88 = vld [vmem:[#allocation5 + $0x10] sm:$0xff]
    %v89 = vld [vmem:[#allocation5 + $0x18] sm:$0xff]
    %v90 = vld [vmem:[#allocation5 + $0x20] sm:$0xff]
    %v91 = vld [vmem:[#allocation5 + $0x28] sm:$0xff]
    %v92 = vld [vmem:[#allocation5 + $0x30] sm:$0xff]
    %v93 = vld [vmem:[#allocation5 + $0x38] sm:$0xff]
    %v94 = vld [vmem:[#allocation5 + $0x40] sm:$0xff]
    %v95 = vld [vmem:[#allocation5 + $0x48] sm:$0xff]
    %v96 = vld [vmem:[#allocation5 + $0x50] sm:$0xff]
    %v97 = vld [vmem:[#allocation5 + $0x58] sm:$0xff]
    %v98 = vld [vmem:[#allocation5 + $0x60] sm:$0xff]
    %v99 = vld [vmem:[#allocation5 + $0x68] sm:$0xff]
    %v100 = vld [vmem:[#allocation5 + $0x70] sm:$0xff]
    %v101 = vld [vmem:[#allocation5 + $0x78] sm:$0xff]
    %v102 = vld [vmem:[#allocation5 + $0x80] sm:$0xff]
    %v103 = vld [vmem:[#allocation5 + $0x88] sm:$0xff]
    %v104 = vld [vmem:[#allocation5 + $0x90] sm:$0xff]
    %v105 = vld [vmem:[#allocation5 + $0x98] sm:$0xff]
    %v106 = vld [vmem:[#allocation5 + $0xa0] sm:$0xff]
    %v107 = vld [vmem:[#allocation5 + $0xa8] sm:$0xff]
    %v108 = vld [vmem:[#allocation5 + $0xb0] sm:$0xff]
    %v109 = vld [vmem:[#allocation5 + $0xb8] sm:$0xff]
    %v110 = vld [vmem:[#allocation5 + $0xc0] sm:$0xff]
    %v111 = vld [vmem:[#allocation5 + $0xc8] sm:$0xff]
    %v112 = vld [vmem:[#allocation5 + $0xd0] sm:$0xff]
    %v113 = vld [vmem:[#allocation5 + $0xd8] sm:$0xff]
    %v114 = vld [vmem:[#allocation5 + $0xe0] sm:$0xff]
    %v115 = vld [vmem:[#allocation5 + $0xe8] sm:$0xff]
    %v116 = vld [vmem:[#allocation5 + $0xf0] sm:$0xff]
    %v117 = vld [vmem:[#allocation5 + $0xf8] sm:$0xff]
    %v118 = vld [vmem:[#allocation5 + $0x100] sm:$0xff]
    %v119 = vld [vmem:[#allocation5 + $0x108] sm:$0xff]
    %v120 = vld [vmem:[#allocation5 + $0x110] sm:$0xff]
    %v121 = vld [vmem:[#allocation5 + $0x118] sm:$0xff]
    %v122 = vld [vmem:[#allocation5 + $0x120] sm:$0xff]
    %v123 = vld [vmem:[#allocation5 + $0x128] sm:$0xff]
    %v124 = vld [vmem:[#allocation5 + $0x130] sm:$0xff]
    %v125 = vld [vmem:[#allocation5 + $0x138] sm:$0xff]
    %v126 = vld [vmem:[#allocation5 + $0x140] sm:$0xff]
    %v127 = vld [vmem:[#allocation5 + $0x148] sm:$0xff]
    %v128 = vld [vmem:[#allocation5 + $0x150] sm:$0xff]
    %v129 = vld [vmem:[#allocation5 + $0x158] sm:$0xff]
    %v130 = vld [vmem:[#allocation5 + $0x160] sm:$0xff]
    %v131 = vld [vmem:[#allocation5 + $0x168] sm:$0xff]
    %v132 = vld [vmem:[#allocation5 + $0x170] sm:$0xff]
    %v133 = vld [vmem:[#allocation5 + $0x178] sm:$0xff]
    %v134 = vld [vmem:[#allocation5 + $0x180] sm:$0xff]
    %v135 = vld [vmem:[#allocation5 + $0x188] sm:$0xff]
    %v136 = vld [vmem:[#allocation5 + $0x190] sm:$0xff]
    %v137 = vld [vmem:[#allocation5 + $0x198] sm:$0xff]
    %v138 = vld [vmem:[#allocation5 + $0x1a0] sm:$0xff]
    %v139 = vld [vmem:[#allocation5 + $0x1a8] sm:$0xff]
    %v140 = vld [vmem:[#allocation5 + $0x1b0] sm:$0xff]
    %v141 = vld [vmem:[#allocation5 + $0x1b8] sm:$0xff]
    %v142 = vld [vmem:[#allocation5 + $0x1c0] sm:$0xff]
    %v143 = vld [vmem:[#allocation5 + $0x1c8] sm:$0xff]
    %v144 = vld [vmem:[#allocation5 + $0x1d0] sm:$0xff]
    %v145 = vld [vmem:[#allocation5 + $0x1d8] sm:$0xff]
    %v146 = vld [vmem:[#allocation5 + $0x1e0] sm:$0xff]
    %v147 = vld [vmem:[#allocation5 + $0x1e8] sm:$0xff]
    %v148 = vld [vmem:[#allocation5 + $0x1f0] sm:$0xff]
    %v149 = vld [vmem:[#allocation5 + $0x1f8] sm:$0xff]
    %v150 = vld [vmem:[#allocation7] sm:$0xf]
    %v152 = vlaneseq
    %v153 = vshrl.u32 %v152, 7
    %v154 = vsub.s32 0, %v153
    %v155 = vrot.slane %v150, %v154
    %v156 = vlaneseq
    %v157 = vshrl.u32 %v156, 7
    %v158 = vsub.s32 1, %v157
    %v159 = vrot.slane %v150, %v158
    %v160 = vlaneseq
    %v161 = vshrl.u32 %v160, 7
    %v162 = vsub.s32 2, %v161
    %v163 = vrot.slane %v150, %v162
    %v164 = vlaneseq
    %v165 = vshrl.u32 %v164, 7
    %v166 = vsub.s32 3, %v165
    %v167 = vrot.slane %v150, %v166
    %172 = vmatprep.subr.mxu0 %v147
    %173 = vmatpush1.msra.mxu0 %v146
    %174 = vmatprep.subr.mxu0 %v143
    %175 = vmatpush1.msra.mxu0 %v142
    %176 = vmatprep.subr.mxu0 %v139
    %177 = vmatpush1.msra.mxu0 %v138
    %178 = vmatprep.subr.mxu0 %v135
    %179 = vmatpush1.msra.mxu0 %v134
    %180 = vmatprep.subr.mxu0 %v131
    %181 = vmatpush1.msra.mxu0 %v130
    %182 = vmatprep.subr.mxu0 %v127
    %183 = vmatpush1.msra.mxu0 %v126
    %184 = vmatprep.subr.mxu0 %v123
    %185 = vmatpush1.msra.mxu0 %v122
    %186 = vmatprep.subr.mxu0 %v119
    %187 = vmatpush1.msra.mxu0 %v118
    %188 = vmatprep.subr.mxu0 %v115
    %189 = vmatpush1.msra.mxu0 %v114
    %190 = vmatprep.subr.mxu0 %v111
    %191 = vmatpush1.msra.mxu0 %v110
    %192 = vmatprep.subr.mxu0 %v107
    %193 = vmatpush1.msra.mxu0 %v106
    %194 = vmatprep.subr.mxu0 %v103
    %195 = vmatpush1.msra.mxu0 %v102
    %196 = vmatprep.subr.mxu0 %v99
    %197 = vmatpush1.msra.mxu0 %v98
    %198 = vmatprep.subr.mxu0 %v95
    %199 = vmatpush1.msra.mxu0 %v94
    %200 = vmatprep.subr.mxu0 %v91
    %201 = vmatpush1.msra.mxu0 %v90
    %202 = vmatprep.subr.mxu0 %v87
    %203 = vmatpush1.msra.mxu0 %v86
    %204 = vmatprep.subr.mxu0 0.0
    %205 = vmatpush2.msra.mxu0 0.0
    %206 = vmatprep.subr.mxu0 0.0
    %207 = vmatpush2.msra.mxu0 0.0
    %208 = vmatprep.subr.mxu0 0.0
    %209 = vmatpush2.msra.mxu0 0.0
    %210 = vmatprep.subr.mxu0 0.0
    %211 = vmatpush2.msra.mxu0 0.0
    %212 = vmatprep.subr.mxu0 0.0
    %213 = vmatpush2.msra.mxu0 0.0
    %214 = vmatprep.subr.mxu0 0.0
    %215 = vmatpush2.msra.mxu0 0.0
    %216 = vmatprep.subr.mxu0 0.0
    %217 = vmatpush2.msra.mxu0 0.0
    %218 = vmatprep.subr.mxu0 0.0
    %219 = vmatpush2.msra.mxu0 0.0
    %220 = vmatprep.subr.mxu0 0.0
    %221 = vmatpush2.msra.mxu0 0.0
    %222 = vmatprep.subr.mxu0 0.0
    %223 = vmatpush2.msra.mxu0 0.0
    %224 = vmatprep.subr.mxu0 0.0
    %225 = vmatpush2.msra.mxu0 0.0
    %226 = vmatprep.subr.mxu0 0.0
    %227 = vmatpush2.msra.mxu0 0.0
    %228 = vmatprep.subr.mxu0 0.0
    %229 = vmatpush2.msra.mxu0 0.0
    %230 = vmatprep.subr.mxu0 0.0
    %231 = vmatpush2.msra.mxu0 0.0
    %232 = vmatprep.subr.mxu0 0.0
    %233 = vmatpush2.msra.mxu0 0.0
    %234 = vmatprep.subr.mxu0 0.0
    %235 = vmatpush2.msra.mxu0 0.0
    %236 = vmatprep.mubr.f32.mxu0 0.0
    %237 = vmatmul.mubr.f32.gmra.mxu0 %v82
    %v238 = vpop.f32.mrf.mxu0
    %v239 = vadd.f32 %v155, %v238
    %v240 = vpop.f32.mrf.mxu0
    %v241 = vadd.f32 %v159, %v240
    %242 = vmatprep.mubr.f32.mxu0 0.0
    %243 = vmatmul.mubr.f32.gmra.mxu0 %v83
    %v244 = vpop.f32.mrf.mxu0
    %v245 = vadd.f32 %v155, %v244
    %v246 = vpop.f32.mrf.mxu0
    %v247 = vadd.f32 %v159, %v246
    %248 = vmatprep.mubr.f32.mxu0 0.0
    %249 = vmatmul.mubr.f32.gmra.mxu0 %v84
    %v250 = vpop.f32.mrf.mxu0
    %v251 = vadd.f32 %v155, %v250
    %v252 = vpop.f32.mrf.mxu0
    %v253 = vadd.f32 %v159, %v252
    %254 = vmatprep.mubr.f32.mxu0 0.0
    %255 = vmatmul.mubr.f32.gmra.mxu0 %v85
    %v256 = vpop.f32.mrf.mxu0
    %v257 = vadd.f32 %v155, %v256
    %v258 = vpop.f32.mrf.mxu0
    %v259 = vadd.f32 %v159, %v258
    %260 = vdwg.mxu0
    %261 = vmatprep.subr.mxu0 %v149
    %262 = vmatpush1.msra.mxu0 %v148
    %263 = vmatprep.subr.mxu0 %v145
    %264 = vmatpush1.msra.mxu0 %v144
    %265 = vmatprep.subr.mxu0 %v141
    %266 = vmatpush1.msra.mxu0 %v140
    %267 = vmatprep.subr.mxu0 %v137
    %268 = vmatpush1.msra.mxu0 %v136
    %269 = vmatprep.subr.mxu0 %v133
    %270 = vmatpush1.msra.mxu0 %v132
    %271 = vmatprep.subr.mxu0 %v129
    %272 = vmatpush1.msra.mxu0 %v128
    %273 = vmatprep.subr.mxu0 %v125
    %274 = vmatpush1.msra.mxu0 %v124
    %275 = vmatprep.subr.mxu0 %v121
    %276 = vmatpush1.msra.mxu0 %v120
    %277 = vmatprep.subr.mxu0 %v117
    %278 = vmatpush1.msra.mxu0 %v116
    %279 = vmatprep.subr.mxu0 %v113
    %280 = vmatpush1.msra.mxu0 %v112
    %281 = vmatprep.subr.mxu0 %v109
    %282 = vmatpush1.msra.mxu0 %v108
    %283 = vmatprep.subr.mxu0 %v105
    %284 = vmatpush1.msra.mxu0 %v104
    %285 = vmatprep.subr.mxu0 %v101
    %286 = vmatpush1.msra.mxu0 %v100
    %287 = vmatprep.subr.mxu0 %v97
    %288 = vmatpush1.msra.mxu0 %v96
    %289 = vmatprep.subr.mxu0 %v93
    %290 = vmatpush1.msra.mxu0 %v92
    %291 = vmatprep.subr.mxu0 %v89
    %292 = vmatpush1.msra.mxu0 %v88
    %293 = vmatprep.subr.mxu0 0.0
    %294 = vmatpush2.msra.mxu0 0.0
    %295 = vmatprep.subr.mxu0 0.0
    %296 = vmatpush2.msra.mxu0 0.0
    %297 = vmatprep.subr.mxu0 0.0
    %298 = vmatpush2.msra.mxu0 0.0
    %299 = vmatprep.subr.mxu0 0.0
    %300 = vmatpush2.msra.mxu0 0.0
    %301 = vmatprep.subr.mxu0 0.0
    %302 = vmatpush2.msra.mxu0 0.0
    %303 = vmatprep.subr.mxu0 0.0
    %304 = vmatpush2.msra.mxu0 0.0
    %305 = vmatprep.subr.mxu0 0.0
    %306 = vmatpush2.msra.mxu0 0.0
    %307 = vmatprep.subr.mxu0 0.0
    %308 = vmatpush2.msra.mxu0 0.0
    %309 = vmatprep.subr.mxu0 0.0
    %310 = vmatpush2.msra.mxu0 0.0
    %311 = vmatprep.subr.mxu0 0.0
    %312 = vmatpush2.msra.mxu0 0.0
    %313 = vmatprep.subr.mxu0 0.0
    %314 = vmatpush2.msra.mxu0 0.0
    %315 = vmatprep.subr.mxu0 0.0
    %316 = vmatpush2.msra.mxu0 0.0
    %317 = vmatprep.subr.mxu0 0.0
    %318 = vmatpush2.msra.mxu0 0.0
    %319 = vmatprep.subr.mxu0 0.0
    %320 = vmatpush2.msra.mxu0 0.0
    %321 = vmatprep.subr.mxu0 0.0
    %322 = vmatpush2.msra.mxu0 0.0
    %323 = vmatprep.subr.mxu0 0.0
    %324 = vmatpush2.msra.mxu0 0.0
    %325 = vmatprep.mubr.f32.mxu0 0.0
    %326 = vmatmul.mubr.f32.gmra.mxu0 %v82
    %v327 = vpop.f32.mrf.mxu0
    %v328 = vadd.f32 %v163, %v327
    %v329 = vpop.f32.mrf.mxu0
    %v330 = vadd.f32 %v167, %v329
    %331 = vmatprep.mubr.f32.mxu0 0.0
    %332 = vmatmul.mubr.f32.gmra.mxu0 %v83
    %v333 = vpop.f32.mrf.mxu0
    %v334 = vadd.f32 %v163, %v333
    %v335 = vpop.f32.mrf.mxu0
    %v336 = vadd.f32 %v167, %v335
    %337 = vmatprep.mubr.f32.mxu0 0.0
    %338 = vmatmul.mubr.f32.gmra.mxu0 %v84
    %v339 = vpop.f32.mrf.mxu0
    %v340 = vadd.f32 %v163, %v339
    %v341 = vpop.f32.mrf.mxu0
    %v342 = vadd.f32 %v167, %v341
    %343 = vmatprep.mubr.f32.mxu0 0.0
    %344 = vmatmul.mubr.f32.gmra.mxu0 %v85
    %v345 = vpop.f32.mrf.mxu0
    %v346 = vadd.f32 %v163, %v345
    %v347 = vpop.f32.mrf.mxu0
    %v348 = vadd.f32 %v167, %v347
    %349 = vdwg.mxu0
    %v350 = vmul.f32 %v239, 0.5
    %v351 = vmul.f32 %v241, 0.5
    %v352 = vmul.f32 %v328, 0.5
    %v353 = vmul.f32 %v330, 0.5
    %v354 = vmul.f32 %v245, 0.5
    %v355 = vmul.f32 %v247, 0.5
    %v356 = vmul.f32 %v334, 0.5
    %v357 = vmul.f32 %v336, 0.5
    %v358 = vmul.f32 %v251, 0.5
    %v359 = vmul.f32 %v253, 0.5
    %v360 = vmul.f32 %v340, 0.5
    %v361 = vmul.f32 %v342, 0.5
    %v362 = vmul.f32 %v257, 0.5
    %v363 = vmul.f32 %v259, 0.5
    %v364 = vmul.f32 %v346, 0.5
    %v365 = vmul.f32 %v348, 0.5
    %v366 = vmul.f32 %v239, 0.70710677
    %v367 = vmul.f32 %v241, 0.70710677
    %v368 = vmul.f32 %v328, 0.70710677
    %v369 = vmul.f32 %v330, 0.70710677
    %v370 = vmul.f32 %v245, 0.70710677
    %v371 = vmul.f32 %v247, 0.70710677
    %v372 = vmul.f32 %v334, 0.70710677
    %v373 = vmul.f32 %v336, 0.70710677
    %v374 = vmul.f32 %v251, 0.70710677
    %v375 = vmul.f32 %v253, 0.70710677
    %v376 = vmul.f32 %v340, 0.70710677
    %v377 = vmul.f32 %v342, 0.70710677
    %v378 = vmul.f32 %v257, 0.70710677
    %v379 = vmul.f32 %v259, 0.70710677
    %v380 = vmul.f32 %v346, 0.70710677
    %v381 = vmul.f32 %v348, 0.70710677
    %v382 = verf.f32.pop %v366
    %v383 = verf.f32.pop %v367
    %v384 = verf.f32.pop %v368
    %v385 = verf.f32.pop %v369
    %v386 = verf.f32.pop %v370
    %v387 = verf.f32.pop %v371
    %v388 = verf.f32.pop %v372
    %v389 = verf.f32.pop %v373
    %v390 = verf.f32.pop %v374
    %v391 = verf.f32.pop %v375
    %v392 = verf.f32.pop %v376
    %v393 = verf.f32.pop %v377
    %v394 = verf.f32.pop %v378
    %v395 = verf.f32.pop %v379
    %v396 = verf.f32.pop %v380
    %v397 = verf.f32.pop %v381
    %v398 = vadd.f32 %v382, 1.0
    %v399 = vadd.f32 %v383, 1.0
    %v400 = vadd.f32 %v384, 1.0
    %v401 = vadd.f32 %v385, 1.0
    %v402 = vadd.f32 %v386, 1.0
    %v403 = vadd.f32 %v387, 1.0
    %v404 = vadd.f32 %v388, 1.0
    %v405 = vadd.f32 %v389, 1.0
    %v406 = vadd.f32 %v390, 1.0
    %v407 = vadd.f32 %v391, 1.0
    %v408 = vadd.f32 %v392, 1.0
    %v409 = vadd.f32 %v393, 1.0
    %v410 = vadd.f32 %v394, 1.0
    %v411 = vadd.f32 %v395, 1.0
    %v412 = vadd.f32 %v396, 1.0
    %v413 = vadd.f32 %v397, 1.0
    %v414 = vmul.f32 %v350, %v398
    %v415 = vmul.f32 %v351, %v399
    %v416 = vmul.f32 %v352, %v400
    %v417 = vmul.f32 %v353, %v401
    %v418 = vmul.f32 %v354, %v402
    %v419 = vmul.f32 %v355, %v403
    %v420 = vmul.f32 %v356, %v404
    %v421 = vmul.f32 %v357, %v405
    %v422 = vmul.f32 %v358, %v406
    %v423 = vmul.f32 %v359, %v407
    %v424 = vmul.f32 %v360, %v408
    %v425 = vmul.f32 %v361, %v409
    %v426 = vmul.f32 %v362, %v410
    %v427 = vmul.f32 %v363, %v411
    %v428 = vmul.f32 %v364, %v412
    %v429 = vmul.f32 %v365, %v413
    %v430 = vld [vmem:[#allocation10] sm:$0xff]
    %v431 = vld [vmem:[#allocation10 + $0x8] sm:$0xff]
    %v432 = vld [vmem:[#allocation10 + $0x10] sm:$0xff]
    %v433 = vld [vmem:[#allocation10 + $0x18] sm:$0xff]
    %v434 = vld [vmem:[#allocation8] sm:$0xff]
    %v435 = vld [vmem:[#allocation8 + $0x8] sm:$0xff]
    %v436 = vld [vmem:[#allocation8 + $0x10] sm:$0xff]
    %v437 = vld [vmem:[#allocation8 + $0x18] sm:$0xff]
    %v438 = vld [vmem:[#allocation8 + $0x20] sm:$0xff]
    %v439 = vld [vmem:[#allocation8 + $0x28] sm:$0xff]
    %v440 = vld [vmem:[#allocation8 + $0x30] sm:$0xff]
    %v441 = vld [vmem:[#allocation8 + $0x38] sm:$0xff]
    %v442 = vld [vmem:[#allocation8 + $0x40] sm:$0xff]
    %v443 = vld [vmem:[#allocation8 + $0x48] sm:$0xff]
    %v444 = vld [vmem:[#allocation8 + $0x50] sm:$0xff]
    %v445 = vld [vmem:[#allocation8 + $0x58] sm:$0xff]
    %v446 = vld [vmem:[#allocation8 + $0x60] sm:$0xff]
    %v447 = vld [vmem:[#allocation8 + $0x68] sm:$0xff]
    %v448 = vld [vmem:[#allocation8 + $0x70] sm:$0xff]
    %v449 = vld [vmem:[#allocation8 + $0x78] sm:$0xff]
    %v450 = vld [vmem:[#allocation8 + $0x80] sm:$0xff]
    %v451 = vld [vmem:[#allocation8 + $0x88] sm:$0xff]
    %v452 = vld [vmem:[#allocation8 + $0x90] sm:$0xff]
    %v453 = vld [vmem:[#allocation8 + $0x98] sm:$0xff]
    %v454 = vld [vmem:[#allocation8 + $0xa0] sm:$0xff]
    %v455 = vld [vmem:[#allocation8 + $0xa8] sm:$0xff]
    %v456 = vld [vmem:[#allocation8 + $0xb0] sm:$0xff]
    %v457 = vld [vmem:[#allocation8 + $0xb8] sm:$0xff]
    %v458 = vld [vmem:[#allocation8 + $0xc0] sm:$0xff]
    %v459 = vld [vmem:[#allocation8 + $0xc8] sm:$0xff]
    %v460 = vld [vmem:[#allocation8 + $0xd0] sm:$0xff]
    %v461 = vld [vmem:[#allocation8 + $0xd8] sm:$0xff]
    %v462 = vld [vmem:[#allocation8 + $0xe0] sm:$0xff]
    %v463 = vld [vmem:[#allocation8 + $0xe8] sm:$0xff]
    %v464 = vld [vmem:[#allocation8 + $0xf0] sm:$0xff]
    %v465 = vld [vmem:[#allocation8 + $0xf8] sm:$0xff]
    %v466 = vld [vmem:[#allocation8 + $0x100] sm:$0xff]
    %v467 = vld [vmem:[#allocation8 + $0x108] sm:$0xff]
    %v468 = vld [vmem:[#allocation8 + $0x110] sm:$0xff]
    %v469 = vld [vmem:[#allocation8 + $0x118] sm:$0xff]
    %v470 = vld [vmem:[#allocation8 + $0x120] sm:$0xff]
    %v471 = vld [vmem:[#allocation8 + $0x128] sm:$0xff]
    %v472 = vld [vmem:[#allocation8 + $0x130] sm:$0xff]
    %v473 = vld [vmem:[#allocation8 + $0x138] sm:$0xff]
    %v474 = vld [vmem:[#allocation8 + $0x140] sm:$0xff]
    %v475 = vld [vmem:[#allocation8 + $0x148] sm:$0xff]
    %v476 = vld [vmem:[#allocation8 + $0x150] sm:$0xff]
    %v477 = vld [vmem:[#allocation8 + $0x158] sm:$0xff]
    %v478 = vld [vmem:[#allocation8 + $0x160] sm:$0xff]
    %v479 = vld [vmem:[#allocation8 + $0x168] sm:$0xff]
    %v480 = vld [vmem:[#allocation8 + $0x170] sm:$0xff]
    %v481 = vld [vmem:[#allocation8 + $0x178] sm:$0xff]
    %v482 = vld [vmem:[#allocation8 + $0x180] sm:$0xff]
    %v483 = vld [vmem:[#allocation8 + $0x188] sm:$0xff]
    %v484 = vld [vmem:[#allocation8 + $0x190] sm:$0xff]
    %v485 = vld [vmem:[#allocation8 + $0x198] sm:$0xff]
    %v486 = vld [vmem:[#allocation8 + $0x1a0] sm:$0xff]
    %v487 = vld [vmem:[#allocation8 + $0x1a8] sm:$0xff]
    %v488 = vld [vmem:[#allocation8 + $0x1b0] sm:$0xff]
    %v489 = vld [vmem:[#allocation8 + $0x1b8] sm:$0xff]
    %v490 = vld [vmem:[#allocation8 + $0x1c0] sm:$0xff]
    %v491 = vld [vmem:[#allocation8 + $0x1c8] sm:$0xff]
    %v492 = vld [vmem:[#allocation8 + $0x1d0] sm:$0xff]
    %v493 = vld [vmem:[#allocation8 + $0x1d8] sm:$0xff]
    %v494 = vld [vmem:[#allocation8 + $0x1e0] sm:$0xff]
    %v495 = vld [vmem:[#allocation8 + $0x1e8] sm:$0xff]
    %v496 = vld [vmem:[#allocation8 + $0x1f0] sm:$0xff]
    %v497 = vld [vmem:[#allocation8 + $0x1f8] sm:$0xff]
    %498 = vmatprep.subr.mxu0 0.0
    %499 = vmatpush1.msra.mxu0 %v449
    %500 = vmatprep.subr.mxu0 0.0
    %501 = vmatpush1.msra.mxu0 %v448
    %502 = vmatprep.subr.mxu0 0.0
    %503 = vmatpush1.msra.mxu0 %v447
    %504 = vmatprep.subr.mxu0 0.0
    %505 = vmatpush1.msra.mxu0 %v446
    %506 = vmatprep.subr.mxu0 0.0
    %507 = vmatpush1.msra.mxu0 %v445
    %508 = vmatprep.subr.mxu0 0.0
    %509 = vmatpush1.msra.mxu0 %v444
    %510 = vmatprep.subr.mxu0 0.0
    %511 = vmatpush1.msra.mxu0 %v443
    %512 = vmatprep.subr.mxu0 0.0
    %513 = vmatpush1.msra.mxu0 %v442
    %514 = vmatprep.subr.mxu0 0.0
    %515 = vmatpush1.msra.mxu0 %v441
    %516 = vmatprep.subr.mxu0 0.0
    %517 = vmatpush1.msra.mxu0 %v440
    %518 = vmatprep.subr.mxu0 0.0
    %519 = vmatpush1.msra.mxu0 %v439
    %520 = vmatprep.subr.mxu0 0.0
    %521 = vmatpush1.msra.mxu0 %v438
    %522 = vmatprep.subr.mxu0 0.0
    %523 = vmatpush1.msra.mxu0 %v437
    %524 = vmatprep.subr.mxu0 0.0
    %525 = vmatpush1.msra.mxu0 %v436
    %526 = vmatprep.subr.mxu0 0.0
    %527 = vmatpush1.msra.mxu0 %v435
    %528 = vmatprep.subr.mxu0 0.0
    %529 = vmatpush1.msra.mxu0 %v434
    %530 = vmatprep.subr.mxu0 0.0
    %531 = vmatpush2.msra.mxu0 %v465
    %532 = vmatprep.subr.mxu0 0.0
    %533 = vmatpush2.msra.mxu0 %v464
    %534 = vmatprep.subr.mxu0 0.0
    %535 = vmatpush2.msra.mxu0 %v463
    %536 = vmatprep.subr.mxu0 0.0
    %537 = vmatpush2.msra.mxu0 %v462
    %538 = vmatprep.subr.mxu0 0.0
    %539 = vmatpush2.msra.mxu0 %v461
    %540 = vmatprep.subr.mxu0 0.0
    %541 = vmatpush2.msra.mxu0 %v460
    %542 = vmatprep.subr.mxu0 0.0
    %543 = vmatpush2.msra.mxu0 %v459
    %544 = vmatprep.subr.mxu0 0.0
    %545 = vmatpush2.msra.mxu0 %v458
    %546 = vmatprep.subr.mxu0 0.0
    %547 = vmatpush2.msra.mxu0 %v457
    %548 = vmatprep.subr.mxu0 0.0
    %549 = vmatpush2.msra.mxu0 %v456
    %550 = vmatprep.subr.mxu0 0.0
    %551 = vmatpush2.msra.mxu0 %v455
    %552 = vmatprep.subr.mxu0 0.0
    %553 = vmatpush2.msra.mxu0 %v454
    %554 = vmatprep.subr.mxu0 0.0
    %555 = vmatpush2.msra.mxu0 %v453
    %556 = vmatprep.subr.mxu0 0.0
    %557 = vmatpush2.msra.mxu0 %v452
    %558 = vmatprep.subr.mxu0 0.0
    %559 = vmatpush2.msra.mxu0 %v451
    %560 = vmatprep.subr.mxu0 0.0
    %561 = vmatpush2.msra.mxu0 %v450
    %562 = vmatprep.mubr.f32.mxu0 %v415
    %563 = vmatmul.mubr.f32.gmra.mxu0 %v414
    %v564 = vpop.f32.mrf.mxu0
    %v565 = vadd.f32 0.0, %v564
    %v566 = vpop.f32.mrf.mxu0
    %567 = vmatprep.mubr.f32.mxu0 %v419
    %568 = vmatmul.mubr.f32.gmra.mxu0 %v418
    %v569 = vpop.f32.mrf.mxu0
    %v570 = vadd.f32 0.0, %v569
    %v571 = vpop.f32.mrf.mxu0
    %572 = vmatprep.mubr.f32.mxu0 %v423
    %573 = vmatmul.mubr.f32.gmra.mxu0 %v422
    %v574 = vpop.f32.mrf.mxu0
    %v575 = vadd.f32 0.0, %v574
    %v576 = vpop.f32.mrf.mxu0
    %577 = vmatprep.mubr.f32.mxu0 %v427
    %578 = vmatmul.mubr.f32.gmra.mxu0 %v426
    %v579 = vpop.f32.mrf.mxu0
    %v580 = vadd.f32 0.0, %v579
    %v581 = vpop.f32.mrf.mxu0
    %582 = vdwg.mxu0
    %583 = vmatprep.subr.mxu0 0.0
    %584 = vmatpush1.msra.mxu0 %v481
    %585 = vmatprep.subr.mxu0 0.0
    %586 = vmatpush1.msra.mxu0 %v480
    %587 = vmatprep.subr.mxu0 0.0
    %588 = vmatpush1.msra.mxu0 %v479
    %589 = vmatprep.subr.mxu0 0.0
    %590 = vmatpush1.msra.mxu0 %v478
    %591 = vmatprep.subr.mxu0 0.0
    %592 = vmatpush1.msra.mxu0 %v477
    %593 = vmatprep.subr.mxu0 0.0
    %594 = vmatpush1.msra.mxu0 %v476
    %595 = vmatprep.subr.mxu0 0.0
    %596 = vmatpush1.msra.mxu0 %v475
    %597 = vmatprep.subr.mxu0 0.0
    %598 = vmatpush1.msra.mxu0 %v474
    %599 = vmatprep.subr.mxu0 0.0
    %600 = vmatpush1.msra.mxu0 %v473
    %601 = vmatprep.subr.mxu0 0.0
    %602 = vmatpush1.msra.mxu0 %v472
    %603 = vmatprep.subr.mxu0 0.0
    %604 = vmatpush1.msra.mxu0 %v471
    %605 = vmatprep.subr.mxu0 0.0
    %606 = vmatpush1.msra.mxu0 %v470
    %607 = vmatprep.subr.mxu0 0.0
    %608 = vmatpush1.msra.mxu0 %v469
    %609 = vmatprep.subr.mxu0 0.0
    %610 = vmatpush1.msra.mxu0 %v468
    %611 = vmatprep.subr.mxu0 0.0
    %612 = vmatpush1.msra.mxu0 %v467
    %613 = vmatprep.subr.mxu0 0.0
    %614 = vmatpush1.msra.mxu0 %v466
    %615 = vmatprep.subr.mxu0 0.0
    %616 = vmatpush2.msra.mxu0 %v497
    %617 = vmatprep.subr.mxu0 0.0
    %618 = vmatpush2.msra.mxu0 %v496
    %619 = vmatprep.subr.mxu0 0.0
    %620 = vmatpush2.msra.mxu0 %v495
    %621 = vmatprep.subr.mxu0 0.0
    %622 = vmatpush2.msra.mxu0 %v494
    %623 = vmatprep.subr.mxu0 0.0
    %624 = vmatpush2.msra.mxu0 %v493
    %625 = vmatprep.subr.mxu0 0.0
    %626 = vmatpush2.msra.mxu0 %v492
    %627 = vmatprep.subr.mxu0 0.0
    %628 = vmatpush2.msra.mxu0 %v491
    %629 = vmatprep.subr.mxu0 0.0
    %630 = vmatpush2.msra.mxu0 %v490
    %631 = vmatprep.subr.mxu0 0.0
    %632 = vmatpush2.msra.mxu0 %v489
    %633 = vmatprep.subr.mxu0 0.0
    %634 = vmatpush2.msra.mxu0 %v488
    %635 = vmatprep.subr.mxu0 0.0
    %636 = vmatpush2.msra.mxu0 %v487
    %637 = vmatprep.subr.mxu0 0.0
    %638 = vmatpush2.msra.mxu0 %v486
    %639 = vmatprep.subr.mxu0 0.0
    %640 = vmatpush2.msra.mxu0 %v485
    %641 = vmatprep.subr.mxu0 0.0
    %642 = vmatpush2.msra.mxu0 %v484
    %643 = vmatprep.subr.mxu0 0.0
    %644 = vmatpush2.msra.mxu0 %v483
    %645 = vmatprep.subr.mxu0 0.0
    %646 = vmatpush2.msra.mxu0 %v482
    %647 = vmatprep.mubr.f32.mxu0 %v417
    %648 = vmatmul.mubr.f32.gmra.mxu0 %v416
    %v649 = vpop.f32.mrf.mxu0
    %v650 = vadd.f32 %v565, %v649
    %v651 = vpop.f32.mrf.mxu0
    %652 = vmatprep.mubr.f32.mxu0 %v421
    %653 = vmatmul.mubr.f32.gmra.mxu0 %v420
    %v654 = vpop.f32.mrf.mxu0
    %v655 = vadd.f32 %v570, %v654
    %v656 = vpop.f32.mrf.mxu0
    %657 = vmatprep.mubr.f32.mxu0 %v425
    %658 = vmatmul.mubr.f32.gmra.mxu0 %v424
    %v659 = vpop.f32.mrf.mxu0
    %v660 = vadd.f32 %v575, %v659
    %v661 = vpop.f32.mrf.mxu0
    %662 = vmatprep.mubr.f32.mxu0 %v429
    %663 = vmatmul.mubr.f32.gmra.mxu0 %v428
    %v664 = vpop.f32.mrf.mxu0
    %v665 = vadd.f32 %v580, %v664
    %v666 = vpop.f32.mrf.mxu0
    %667 = vdwg.mxu0
    %v668 = vadd.f32 %v430, %v650
    %v669 = vadd.f32 %v431, %v655
    %v670 = vadd.f32 %v432, %v660
    %v671 = vadd.f32 %v433, %v665
    %672 = vst [vmem:[#allocation10] sm:$0xff] %v668
    %673 = vst [vmem:[#allocation10 + $0x8] sm:$0xff] %v669
    %674 = vst [vmem:[#allocation10 + $0x10] sm:$0xff] %v670
    %675 = vst [vmem:[#allocation10 + $0x18] sm:$0xff] %v671
    // Predicated region
    $region42: #{tpu_custom_call.1} parent=1 // pred_check
      %p676 = pneg %p74
    $region43: #{tpu_custom_call.1} parent=1 // pred_check_branch
      %678 = sbr.rel (%p676) target = $region45
    $region44: #{tpu_custom_call.1} parent=1 // pred_region
      %v679 = vld [vmem:[#allocation10] sm:$0xff]
      %v680 = vld [vmem:[#allocation10 + $0x8] sm:$0xff]
      %v681 = vld [vmem:[#allocation10 + $0x10] sm:$0xff]
      %v682 = vld [vmem:[#allocation10 + $0x18] sm:$0xff]
      %v683 = vld [vmem:[%s4] sm:$0x1]
      %v685 = vlaneseq
      %v686 = vshrl.u32 %v685, 7
      %v687 = vsub.s32 0, %v686
      %v688 = vrot.slane %v683, %v687
      %v690 = vadd.f32 %v679, %v688
      %v691 = vadd.f32 %v680, %v688
      %v692 = vadd.f32 %v681, %v688
      %v693 = vadd.f32 %v682, %v688
      %694 = vst [vmem:[#allocation10] sm:$0xff] %v690
      %695 = vst [vmem:[#allocation10 + $0x8] sm:$0xff] %v691
      %696 = vst [vmem:[#allocation10 + $0x10] sm:$0xff] %v692
      %697 = vst [vmem:[#allocation10 + $0x18] sm:$0xff] %v693
    $region45: #{tpu_custom_call.1} parent=1 // pred_fallthru
      _
    // Predicated region
    $region46: #{tpu_custom_call.1} parent=1 // pred_check
      _
    $region47: #{tpu_custom_call.1} parent=1 // pred_check_branch
      %699 = sbr.rel (0) target = $region49
    $region48: #{tpu_custom_call.1} parent=1 // pred_region
      %s701 = ssub.s32 512, 512
      %702 = vsyncadd [#allocation4], %s701
      %s703 = sshll.u32 [#allocation10], 4
      %s704 = int_to_ptr.vmem [resolvable:$true] %s703
      %709 = dma.vmem_to_hbm [thread:$0]  %s704, 512, %s5, [#allocation4], 128, 128, 8
    $region49: #{tpu_custom_call.1} parent=1 // pred_fallthru
      _
    // Predicated region
    $region50: #{tpu_custom_call.1} parent=1 // pred_check
      _
    $region51: #{tpu_custom_call.1} parent=1 // pred_check_branch
      %711 = sbr.rel (0) target = $region53
    $region52: #{tpu_custom_call.1} parent=1 // pred_region
      %712 = dma.done [#allocation4], 512
    $region53: #{tpu_custom_call.1} parent=1 // pred_fallthru
      _
    %713 = vsyncpa [#allocation3], 1
    %714 = vsyncpa [#allocation6], 1
    %715 = vsyncpa [#allocation9], 1
    %716 = vsyncpa [#allocation4], 1

</llo_original>
